<compile_context>
chip_gen: v5e
topology: v5e:2x2
jax: 0.10.0
libtpu: 0.0.40
codegen_flags: <defaults>
</compile_context>

<pallas_src>
import math
import jax
import jax.numpy as jnp
from jax.experimental import pallas as pl
from jax.experimental.pallas import tpu as pltpu


_SQRT_2_OVER_PI = math.sqrt(2.0 / math.pi)
_GELU_COEFF = 0.044715
_LANES = 128


def _new_gelu_math(xf):
    # 0.5 * x * (1 + tanh(sqrt(2/pi) * (x + 0.044715 * x^3)))
    inner = xf * (_SQRT_2_OVER_PI + (_SQRT_2_OVER_PI * _GELU_COEFF) * xf * xf)
    return 0.5 * xf * (1.0 + jnp.tanh(inner))


def _new_gelu_kernel(x_ref, o_ref):
    xf = x_ref[...].astype(jnp.float32)       # f32 compute (mandatory on v5e anyway)
    o_ref[...] = _new_gelu_math(xf).astype(o_ref.dtype)


def new_gelu(x, *, target_block_bytes=2 * 1024 * 1024, min_pallas_elems=16384):
    """Apply NewGELU elementwise to x (any shape, any float dtype)."""
    orig_shape = x.shape
    orig_dtype = x.dtype
    n = x.size
    if n == 0:
        return x
    if n < min_pallas_elems:
        # Tiny tensors: kernel launch overhead dwarfs the work; plain jnp is faster.
        return _new_gelu_math(x.astype(jnp.float32)).astype(orig_dtype)

    itemsize = jnp.dtype(orig_dtype).itemsize
    sub = max(8, 32 // itemsize)   # sublane multiple: 8 (f32), 16 (bf16), 32 (8-bit)

    # Lane-dense 2D slab; pad only if flat length isn't 128-aligned (tail-only pad).
    pad = (-n) % _LANES
    x_flat = jnp.ravel(x)
    if pad:
        x_flat = jnp.pad(x_flat, (0, pad))
    rows = (n + pad) // _LANES
    x2d = x_flat.reshape(rows, _LANES)

    if rows <= sub:
        # Single block equal to the full array dims (always legal).
        block_rows = rows
    else:
        # ~target_block_bytes per step, multiple of the sublane tile.
        block_rows = max(sub, (target_block_bytes // (_LANES * itemsize)) // sub * sub)
        # Keep at least 2 grid steps so both v7x TensorCores get work
        # (neutral on single-TC v5e/v6e).
        half_rows = pl.cdiv(pl.cdiv(rows, 2), sub) * sub
        block_rows = min(block_rows, half_rows)

    grid = (pl.cdiv(rows, block_rows),)

    out2d = pl.pallas_call(
        _new_gelu_kernel,
        out_shape=jax.ShapeDtypeStruct((rows, _LANES), orig_dtype),
        grid_spec=pltpu.PrefetchScalarGridSpec(
            num_scalar_prefetch=0,
            grid=grid,
            in_specs=[pl.BlockSpec((block_rows, _LANES), lambda i: (i, 0))],
            out_specs=pl.BlockSpec((block_rows, _LANES), lambda i: (i, 0)),
        ),
        compiler_params=pltpu.CompilerParams(
            dimension_semantics=("parallel",),
        ),
    )(x2d)

    out_flat = out2d.reshape(-1)
    if pad:
        out_flat = out_flat[:n]
    return out_flat.reshape(orig_shape)


def new_gelu_ref(x):
    xf = x.astype(jnp.float32)
    return (0.5 * xf * (1.0 + jnp.tanh(_SQRT_2_OVER_PI * (xf + _GELU_COEFF * xf ** 3)))).astype(x.dtype)


if __name__ == "__main__":
    key = jax.random.PRNGKey(0)
    k1, k2, k3 = jax.random.split(key, 3)

    # 1) NCHW-like, 128-aligned size (no pad / no slice path), f32, 2-step grid
    x1 = jax.random.normal(k1, (2, 4, 16, 16), dtype=jnp.float32)
    y1 = jax.block_until_ready(new_gelu(x1, min_pallas_elems=0))
    assert y1.shape == x1.shape and y1.dtype == x1.dtype
    assert jnp.allclose(y1, new_gelu_ref(x1), atol=1e-5, rtol=1e-5), "mismatch (aligned)"

    # 2) non-128-multiple flat size (tail-pad + slice path), f32
    x2 = jax.random.normal(k2, (3, 5, 7), dtype=jnp.float32)
    y2 = jax.block_until_ready(new_gelu(x2, min_pallas_elems=0))
    assert y2.shape == x2.shape
    assert jnp.allclose(y2, new_gelu_ref(x2), atol=1e-5, rtol=1e-5), "mismatch (unaligned)"

    # 3) ragged last grid block (rows not a multiple of block_rows), f32
    x3 = jax.random.normal(k3, (10, 256), dtype=jnp.float32)
    y3 = jax.block_until_ready(new_gelu(x3, min_pallas_elems=0))
    assert jnp.allclose(y3, new_gelu_ref(x3), atol=1e-5, rtol=1e-5), "mismatch (ragged)"

    # 4) bf16 input (f32 internal compute, cast back)
    x4 = x1.astype(jnp.bfloat16)
    y4 = jax.block_until_ready(new_gelu(x4, min_pallas_elems=0))
    assert y4.dtype == jnp.bfloat16
    assert jnp.allclose(y4.astype(jnp.float32), new_gelu_ref(x4).astype(jnp.float32),
                        atol=2e-2, rtol=2e-2), "mismatch (bf16)"

    print("KERNEL_OK")
</pallas_src>

<mosaic_0001>
module attributes {stable_mosaic.version = 11 : i64} {
  func.func @_new_gelu_kernel(%arg0: i32, %arg1: memref<8x128xf32, #tpu.memory_space<vmem>>, %arg2: memref<8x128xf32, #tpu.memory_space<vmem>>) attributes {dimension_semantics = [#tpu.dimension_semantics<parallel>], iteration_bounds = array<i64: 2>, scalar_prefetch = 0 : i64, scratch_operands = 0 : i64, tpu.core_type = #tpu.core_type<tc>, window_params = [{transform_indices = @transform_0, window_bounds = array<i64: 8, 128>}, {transform_indices = @transform_1, window_bounds = array<i64: 8, 128>}]} {
    %c0 = arith.constant 0 : index
    %c0_0 = arith.constant 0 : index
    %0 = vector.load %arg1[%c0, %c0_0] : memref<8x128xf32, #tpu.memory_space<vmem>>, vector<8x128xf32>
    %cst = arith.constant 0.0356774069 : f32
    %1 = vector.broadcast %cst : f32 to vector<8x128xf32>
    %2 = arith.mulf %1, %0 : vector<8x128xf32>
    %3 = arith.mulf %2, %0 : vector<8x128xf32>
    %cst_1 = arith.constant 0.797884583 : f32
    %4 = vector.broadcast %cst_1 : f32 to vector<8x128xf32>
    %5 = arith.addf %4, %3 : vector<8x128xf32>
    %6 = arith.mulf %0, %5 : vector<8x128xf32>
    %cst_2 = arith.constant 5.000000e-01 : f32
    %7 = vector.broadcast %cst_2 : f32 to vector<8x128xf32>
    %8 = arith.mulf %7, %0 : vector<8x128xf32>
    %9 = math.tanh %6 : vector<8x128xf32>
    %cst_3 = arith.constant 1.000000e+00 : f32
    %10 = vector.broadcast %cst_3 : f32 to vector<8x128xf32>
    %11 = arith.addf %10, %9 : vector<8x128xf32>
    %12 = arith.mulf %8, %11 : vector<8x128xf32>
    %c0_4 = arith.constant 0 : index
    %c0_5 = arith.constant 0 : index
    %13 = vector.load %arg2[%c0_4, %c0_5] : memref<8x128xf32, #tpu.memory_space<vmem>>, vector<8x128xf32>
    tpu.vector_store %arg2[%c0_4, %c0_5], %12 {strides = array<i32>} : memref<8x128xf32, #tpu.memory_space<vmem>>, vector<8x128xf32>,
    return
  }
  func.func @transform_0(%arg0: i32) -> (i32, i32) {
    %c0_i32 = arith.constant 0 : i32
    %c0_i32_0 = arith.constant 0 : i32
    return %arg0, %c0_i32 : i32, i32
  }
  func.func @transform_1(%arg0: i32) -> (i32, i32) {
    %c0_i32 = arith.constant 0 : i32
    %c0_i32_0 = arith.constant 0 : i32
    return %arg0, %c0_i32 : i32, i32
  }
}

</mosaic_0001>

<llo_original>
// kernel: tpu_custom_call.1
$region0: #{tpu_custom_call.1}
  #allocation0 [shape = 'u32[]', space=smem, size = 0x4, offset = 0x4, fixed_abs, tag = 'smem constant byte address 0x4 - core index']
  #allocation1 [shape = 'u32[72,128]{1,0:T(1,128)}', space=vmem, size = 0x9000, scoped, tag = 'internal scratch']
  %s0 = inlined_call_operand.hbm [shape: f32[16,128], index: 0, kind: input, shape index: {}]
  %s1 = inlined_call_operand.hbm [shape: f32[16,128], index: 1, kind: output, shape index: {}]
  %s2 = sld [smem:[#allocation0]]
  $region41: #{tpu_custom_call.1} parent=0
    _
  %s4 = ssub.s32 1, %s2
  %s5 = scalar_select 0, %s4, %s2
  $region1: #{tpu_custom_call.1} parent=0
    #allocation2 [shape = 'u8[8192]{0}', space=vmem, size = 0x2000, scoped, tag = 'input window, operand 0']
    #allocation3 [shape = 's32[2]{0}', space=sflag, size = 0x8, scoped, tag = 'scoped memory for tpu_custom_call.1']
    #allocation4 [shape = 's32[2]{0}', space=sflag, size = 0x8, scoped, tag = 'scoped memory for tpu_custom_call.1']
    #allocation5 [shape = 'u8[8192]{0}', space=vmem, size = 0x2000, scoped, tag = 'output window, operand 0']
    %6 = vsyncpa [#allocation3], 0
    %s7 = scalar_lea.sflag [#allocation3], 1
    %8 = vsyncpa %s7, 0
    %9 = vsyncpa [#allocation4], 0
    %s10 = scalar_lea.sflag [#allocation4], 1
    %11 = vsyncpa %s10, 0
    loop: start=0, step=1, limit=4
    $region2: #{tpu_custom_call.1} parent=1 // loop_pre_header
      _
    $region3: #{tpu_custom_call.1} parent=1 // loop_header
      %s13 = sphi 0, %s17
      %p14 = scmp.ge.s32.totalorder %s13, 4
      %s23 = sphi 0, %s25
      %s26 = sphi 0, %s23
      %s27 = sphi 0, %s26
      %s43 = sphi 0, %s27
      %s49 = sphi 0, %s51
      %s52 = sphi 0, %s49
      %s53 = sphi 0, %s52
      %s69 = sphi 0, %s53
    $region4: #{tpu_custom_call.1} parent=1 // loop_header_branch
      %16 = sbr.rel (%p14) target = $region8
    $region5: #{tpu_custom_call.1} parent=1 // loop_body
      %s18 = ssub.s32 %s13, 1
      %s19 = ssub.s32 %s13, 2
      %s20 = sadd.s32 %s13, 1
      %s21 = ssub.s32 %s13, %s20
      %p22 = scmp.eq.s32.totalorder %s21, 0
      %s24 = sadd.s32 %s23, 1
      %s25 = scalar_select %p22, %s23, %s24
      %p28 = pneg %p22
      %p29 = scmp.eq.s32.totalorder %s13, 1
      %p30 = por %p28, %p29
      %p31 = scmp.ne.s32.totalorder %s23, %s26
      %p32 = scmp.eq.s32.totalorder %s13, 0
      %p33 = por %p31, %p32
      %p34 = scmp.ne.s32.totalorder %s23, %s26
      %p35 = scmp.eq.s32.totalorder %s18, 1
      %p36 = por %p34, %p35
      %p37 = scmp.ne.s32.totalorder %s26, %s27
      %p38 = scmp.eq.s32.totalorder %s18, 0
      %p39 = por %p37, %p38
      %p40 = scmp.ne.s32.totalorder %s26, %s27
      %p41 = scmp.eq.s32.totalorder %s19, 1
      %p42 = por %p40, %p41
      %p44 = scmp.ne.s32.totalorder %s27, %s43
      %p45 = scmp.eq.s32.totalorder %s19, 0
      %p46 = por %p44, %p45
      %s47 = ssub.s32 %s13, %s20
      %p48 = scmp.eq.s32.totalorder %s47, 0
      %s50 = sadd.s32 %s49, 1
      %s51 = scalar_select %p48, %s49, %s50
      %p54 = pneg %p48
      %p55 = scmp.eq.s32.totalorder %s13, 1
      %p56 = por %p54, %p55
      %p57 = scmp.ne.s32.totalorder %s49, %s52
      %p58 = scmp.eq.s32.totalorder %s13, 0
      %p59 = por %p57, %p58
      %p60 = scmp.ne.s32.totalorder %s49, %s52
      %p61 = scmp.eq.s32.totalorder %s18, 1
      %p62 = por %p60, %p61
      %p63 = scmp.ne.s32.totalorder %s52, %s53
      %p64 = scmp.eq.s32.totalorder %s18, 0
      %p65 = por %p63, %p64
      %p66 = scmp.ne.s32.totalorder %s52, %s53
      %p67 = scmp.eq.s32.totalorder %s19, 1
      %p68 = por %p66, %p67
      %p70 = scmp.ne.s32.totalorder %s53, %s69
      %p71 = scmp.eq.s32.totalorder %s19, 0
      %p72 = por %p70, %p71
      %p73 = scmp.le.s32.totalorder 1, %s13
      %p74 = scmp.lt.s32.totalorder %s13, 3
      %p75 = pnand %p73, %p74
      %p76 = pneg %p75
      // Predicated region
      $region9: #{tpu_custom_call.1} parent=5 // pred_check
        _
      $region10: #{tpu_custom_call.1} parent=5 // pred_check_branch
        %78 = sbr.rel (%p75) target = $region12
      $region11: #{tpu_custom_call.1} parent=5 // pred_region
        %s79 = ssub.s32 %s13, 1
      $region12: #{tpu_custom_call.1} parent=5 // pred_fallthru
        _
      %p80 = scmp.lt.s32.totalorder %s13, 2
      // Predicated region
      $region13: #{tpu_custom_call.1} parent=5 // pred_check
        %p81 = pneg %p80
      $region14: #{tpu_custom_call.1} parent=5 // pred_check_branch
        %83 = sbr.rel (%p81) target = $region16
      $region15: #{tpu_custom_call.1} parent=5 // pred_region
        // Predicated region
        $region17: #{tpu_custom_call.1} parent=15 // pred_check
          %p84 = pneg %p33
        $region18: #{tpu_custom_call.1} parent=15 // pred_check_branch
          %86 = sbr.rel (%p84) target = $region20
        $region19: #{tpu_custom_call.1} parent=15 // pred_region
          %s87 = sand.u32 %s23, 1
          %s88 = scalar_lea.sflag [#allocation3], %s87
          %s89 = sand.u32 %s23, 1
          %s90 = smul.addr %s89, 8
          %s91 = scalar_lea.vmem [#allocation2], %s90
          %93 = vsyncadd %s88, 0
          %s94 = smul.addr %s13, 8
          %s95 = scalar_lea.hbm %s0, %s94
          %s97 = sshll.u32 %s95, 4
          %s98 = int_to_ptr.hbm [resolvable:$true] %s97
          %s99 = sshll.u32 %s91, 4
          %s100 = int_to_ptr.vmem [resolvable:$true] %s99
          %102 = dma.hbm_to_vmem [thread:$0]  %s98, 128, %s100, %s88
        $region20: #{tpu_custom_call.1} parent=15 // pred_fallthru
          _
      $region16: #{tpu_custom_call.1} parent=5 // pred_fallthru
        _
      %p103 = scmp.le.s32.totalorder 1, %s13
      %p104 = scmp.lt.s32.totalorder %s13, 3
      %p105 = pnand %p103, %p104
      %p106 = pneg %p105
      // Predicated region
      $region21: #{tpu_custom_call.1} parent=5 // pred_check
        _
      $region22: #{tpu_custom_call.1} parent=5 // pred_check_branch
        %108 = sbr.rel (%p105) target = $region24
      $region23: #{tpu_custom_call.1} parent=5 // pred_region
        %s109 = ssub.s32 %s13, 1
        %s110 = sand.u32 %s26, 1
        %s111 = scalar_lea.sflag [#allocation3], %s110
        %s112 = sand.u32 %s26, 1
        %s113 = smul.addr %s112, 8
        %s114 = scalar_lea.vmem [#allocation2], %s113
        // Predicated region
        $region25: #{tpu_custom_call.1} parent=23 // pred_check
          %p115 = pneg %p39
        $region26: #{tpu_custom_call.1} parent=23 // pred_check_branch
          %117 = sbr.rel (%p115) target = $region28
        $region27: #{tpu_custom_call.1} parent=23 // pred_region
          %119 = dma.done %s111, 128
        $region28: #{tpu_custom_call.1} parent=23 // pred_fallthru
          _
        %s120 = sand.u32 %s26, 1
        %s121 = scalar_lea.sflag [#allocation3], %s120
        %s122 = sand.u32 %s26, 1
        %s123 = smul.addr %s122, 8
        %s124 = scalar_lea.vmem [#allocation2], %s123
        %p125 = pneg %p39
        %p126 = pneg %p36
        %p127 = pneg %p65
        %p128 = pneg %p62
        %s129 = sand.u32 %s52, 1
        %s130 = scalar_lea.sflag [#allocation4], %s129
        %s131 = sand.u32 %s52, 1
        %s132 = smul.addr %s131, 8
        %s133 = scalar_lea.vmem [#allocation5], %s132
        %v134 = vld [vmem:[%s114] sm:$0xff]
        %v135 = vmul.f32 %v134, 0.035677407
        %v136 = vmul.f32 %v135, %v134
        %v137 = vadd.f32 %v136, 0.7978846
        %v138 = vmul.f32 %v134, %v137
        %v139 = vmul.f32 %v134, 0.5
        %v140 = vtanh.pop %v138
        %v141 = vadd.f32 %v140, 1.0
        %v142 = vmul.f32 %v139, %v141
        %143 = vst [vmem:[%s133] sm:$0xff] %v142
        %s144 = sand.u32 %s52, 1
        %s145 = scalar_lea.sflag [#allocation4], %s144
        %s146 = sand.u32 %s52, 1
        %s147 = smul.addr %s146, 8
        %s148 = scalar_lea.vmem [#allocation5], %s147
        // Predicated region
        $region29: #{tpu_custom_call.1} parent=23 // pred_check
          %p149 = pneg %p62
        $region30: #{tpu_custom_call.1} parent=23 // pred_check_branch
          %151 = sbr.rel (%p149) target = $region32
        $region31: #{tpu_custom_call.1} parent=23 // pred_region
          %153 = vsyncadd %s145, 0
          %s154 = smul.addr %s18, 8
          %s155 = scalar_lea.hbm %s1, %s154
          %s157 = sshll.u32 %s148, 4
          %s158 = int_to_ptr.vmem [resolvable:$true] %s157
          %s159 = sshll.u32 %s155, 4
          %s160 = int_to_ptr.hbm [resolvable:$true] %s159
          %162 = dma.vmem_to_hbm [thread:$0]  %s158, 128, %s160, %s145
        $region32: #{tpu_custom_call.1} parent=23 // pred_fallthru
          _
      $region24: #{tpu_custom_call.1} parent=5 // pred_fallthru
        _
      %p163 = scmp.le.s32.totalorder 2, %s13
      // Predicated region
      $region33: #{tpu_custom_call.1} parent=5 // pred_check
        %p164 = pneg %p163
      $region34: #{tpu_custom_call.1} parent=5 // pred_check_branch
        %166 = sbr.rel (%p164) target = $region36
      $region35: #{tpu_custom_call.1} parent=5 // pred_region
        %s167 = ssub.s32 %s13, 2
        // Predicated region
        $region37: #{tpu_custom_call.1} parent=35 // pred_check
          %p168 = pneg %p68
        $region38: #{tpu_custom_call.1} parent=35 // pred_check_branch
          %170 = sbr.rel (%p168) target = $region40
        $region39: #{tpu_custom_call.1} parent=35 // pred_region
          %s171 = sand.u32 %s53, 1
          %s172 = scalar_lea.sflag [#allocation4], %s171
          %s173 = sand.u32 %s53, 1
          %s174 = smul.addr %s173, 8
          %s175 = scalar_lea.vmem [#allocation5], %s174
          %177 = dma.done %s172, 128
        $region40: #{tpu_custom_call.1} parent=35 // pred_fallthru
          _
      $region36: #{tpu_custom_call.1} parent=5 // pred_fallthru
        _
    $region6: #{tpu_custom_call.1} parent=1 // loop_footer
      %s17 = sadd.s32 1, %s13
    $region7: #{tpu_custom_call.1} parent=1 // loop_footer_branch
      %12 = sbr.rel target = $region3
    $region8: #{tpu_custom_call.1} parent=1 // loop_exit
      _
    %178 = vsyncpa [#allocation3], 1
    %s179 = scalar_lea.sflag [#allocation3], 1
    %180 = vsyncpa %s179, 1
    %181 = vsyncpa [#allocation4], 1
    %s182 = scalar_lea.sflag [#allocation4], 1
    %183 = vsyncpa %s182, 1

</llo_original>
